<compile_context>
chip_gen: v6e
topology: v6e:2x2x1
jax: 0.10.0
libtpu: 0.0.40
codegen_flags: <defaults>
</compile_context>

<pallas_src>
import jax
import jax.numpy as jnp
from jax import lax
from jax.experimental import pallas as pl
from jax.experimental.pallas import tpu as pltpu

N_UNITS = 32
N_HEADS = 8
CHUNK = N_UNITS // N_HEADS           # 4
SCALE = 1.0 / (CHUNK ** 0.5)

# Cap on the side of the all-pairs (head x position) score matrix G = bblk * S * H.
MAX_G = 1024


def _pick_bblk(B, S):
    """Batch elements folded into one grid step.

    Fewer, wider grid steps beat per-step overhead on all of v5e/v6e/v7x, so fold as
    much of the batch as the block-diagonal score matrix (G = bblk*S*H per side)
    allows.  We do NOT force >=2 grid steps: on v5e/v6e (single TensorCore) extra
    steps are pure serial overhead; on v7x dual-TC sharding only pays off once each
    step is already lane-dense, which these shapes are not.
    """
    best = 1
    for d in range(1, B + 1):
        if B % d == 0 and d * S * N_HEADS <= MAX_G:
            best = d
    return best


def _make_kernel(S, bblk):
    U, H, C = N_UNITS, N_HEADS, CHUNK
    L = bblk * S          # positions handled per grid step
    G = L * H             # rows of the head-stacked Q/K/V

    def kernel(x_ref, cmask_ref, cinv_ref, bidr_ref, bidc_ref,
               wqkv_ref, wout_ref, o_ref, stack_ref, cht_ref):
        xT = x_ref[0]                      # (L, U)  positions on sublanes
        cmask = cmask_ref[0]               # (L, 1)  1.0 valid / 0.0 padded position
        cinv = cinv_ref[0]                 # (L, 1)  SCALE / n_valid per position

        # Zero padded positions once on the input (replaces the old (H,S,S) select).
        xm = (xT * cmask).astype(jnp.bfloat16)
        wqkv = wqkv_ref[...].astype(jnp.bfloat16)

        # Fused QKV projection: one lane-dense MXU matmul, f32 accumulation.
        qkvT = jnp.dot(xm, wqkv, preferred_element_type=jnp.float32)   # (L, 3U)

        # Stack heads along rows: stack_ref[t, h*L + l, c] = (Q|K|V)[h, c, position l].
        # Static lane slices -> static sublane stores (no reshapes / transposes).
        for t in range(3):
            for h in range(H):
                stack_ref[t, h * L:(h + 1) * L, :] = \
                    qkvT[:, t * U + h * C: t * U + (h + 1) * C]
        aq = stack_ref[0]                  # (G, C)
        ak = stack_ref[1]                  # (G, C)
        av = stack_ref[2]                  # (G, C)

        # ONE score matmul for all heads and all folded batch elements: contraction
        # is only C=4 wide, so the masked-off cross-head / cross-element blocks are
        # free MXU work, while MXU push/pop count drops ~8x vs per-head matmuls.
        s_big = lax.dot_general(
            aq.astype(jnp.bfloat16), ak.astype(jnp.bfloat16),
            (((1,), (1,)), ((), ())),
            preferred_element_type=jnp.float32)                        # (G, G)

        # Block-diagonal keep mask from precomputed (head, element) block ids:
        # a single vector compare, no int div/mod on the VPU.
        keep = bidr_ref[...] == bidc_ref[...]                          # (G, G)
        # relu activation; padded query/key positions are already exactly zero.
        p = jnp.where(keep, jnp.maximum(s_big, 0.0), 0.0)

        # P @ V for all heads at once.
        chg = jnp.dot(p.astype(jnp.bfloat16), av.astype(jnp.bfloat16),
                      preferred_element_type=jnp.float32)              # (G, C)

        # Un-stack heads back to (L, U) head-major channels (torch concat order).
        for h in range(H):
            cht_ref[:, h * C:(h + 1) * C] = chg[h * L:(h + 1) * L, :]

        wout = wout_ref[...].astype(jnp.bfloat16)
        outT = jnp.dot(cht_ref[...].astype(jnp.bfloat16), wout,
                       preferred_element_type=jnp.float32)             # (L, U)
        # Per-position SCALE / n_valid normalisation commutes with the finishing
        # (row-preserving) matmul, so apply it once here.
        o_ref[0] = outT * cinv

    return kernel


def multi_head_attention(x, lengths, w_qkv, w_out):
    """x: (B, n_units, S) f32; lengths: (B,) int valid set sizes;
    w_qkv: (3*n_units, n_units); w_out: (n_units, n_units).  Returns (B, n_units, S)."""
    B, U, S = x.shape
    assert U == N_UNITS
    if S * N_HEADS > MAX_G:
        # TODO(synk): tiled large-S path not implemented (not needed for set matching).
        raise NotImplementedError(
            "MultiHeadAttention Pallas kernel supports S <= %d" % (MAX_G // N_HEADS))

    bblk = _pick_bblk(B, S)
    nb = B // bblk
    L = bblk * S
    G = L * N_HEADS

    # Positions-on-rows slab (nb, L, U): one host-side transpose that removes every
    # in-kernel transpose / per-head relayout for the small-S set-matching regime.
    x_t = x.reshape(nb, bblk, U, S).transpose(0, 1, 3, 2).reshape(nb, L, U)

    lengths = lengths.astype(jnp.int32)
    pos = jnp.arange(S, dtype=jnp.int32)
    valid = (pos[None, :] < lengths[:, None]).astype(jnp.float32)       # (B, S)
    colmask = valid.reshape(nb, L, 1)
    inv = SCALE / jnp.maximum(lengths.astype(jnp.float32), 1.0)         # (B,)
    colinv = jnp.broadcast_to(inv[:, None], (B, S)).reshape(nb, L, 1)

    # Unique (head, folded-batch-element) block id per stacked row (r = h*L + j*S + s).
    blk = (jnp.arange(N_HEADS, dtype=jnp.int32)[:, None, None] * bblk
           + jnp.arange(bblk, dtype=jnp.int32)[None, :, None])          # (H, bblk, 1)
    blk = jnp.broadcast_to(blk, (N_HEADS, bblk, S)).reshape(G)
    bid_r = blk.reshape(G, 1)
    bid_c = blk.reshape(1, G)

    w_qkv_t = jnp.transpose(w_qkv)        # (U, 3U)  (tiny, one-time)
    w_out_t = jnp.transpose(w_out)        # (U, U)

    kernel = _make_kernel(S, bblk)
    out_t = pl.pallas_call(
        kernel,
        out_shape=jax.ShapeDtypeStruct((nb, L, U), jnp.float32),
        grid=(nb,),
        in_specs=[
            pl.BlockSpec((1, L, U), lambda i: (i, 0, 0)),      # x slab
            pl.BlockSpec((1, L, 1), lambda i: (i, 0, 0)),      # validity mask
            pl.BlockSpec((1, L, 1), lambda i: (i, 0, 0)),      # SCALE / n_valid
            pl.BlockSpec((G, 1), lambda i: (0, 0)),            # block ids (rows)
            pl.BlockSpec((1, G), lambda i: (0, 0)),            # block ids (cols)
            pl.BlockSpec((U, 3 * U), lambda i: (0, 0)),        # w_QKV^T
            pl.BlockSpec((U, U), lambda i: (0, 0)),            # finishing linear^T
        ],
        out_specs=pl.BlockSpec((1, L, U), lambda i: (i, 0, 0)),
        scratch_shapes=[
            pltpu.VMEM((3, G, CHUNK), jnp.float32),            # head-stacked Q/K/V
            pltpu.VMEM((L, N_UNITS), jnp.float32),             # un-stacked C^T
        ],
        compiler_params=pltpu.CompilerParams(
            dimension_semantics=("parallel",),
            vmem_limit_bytes=48 * 1024 * 1024,   # explicit: v7x has only 64 MiB VMEM
        ),
    )(x_t, colmask, colinv, bid_r, bid_c, w_qkv_t, w_out_t)

    # Unfold back to the module's (B, U, S) layout.
    return out_t.reshape(nb, bblk, S, N_UNITS).transpose(0, 1, 3, 2).reshape(B, U, S)


def reference(x, mask, w_qkv, w_out):
    """Pure-JAX f32 reference reproducing the PyTorch forward semantics."""
    B, U, S = x.shape
    qkv = jnp.einsum('ou,bus->bos', w_qkv, x)
    Q, K, V = qkv[:, :U], qkv[:, U:2 * U], qkv[:, 2 * U:]
    Qh = Q.reshape(B, N_HEADS, CHUNK, S)
    Kh = K.reshape(B, N_HEADS, CHUNK, S)
    Vh = V.reshape(B, N_HEADS, CHUNK, S)
    scores = jnp.einsum('bhcq,bhck->bhqk', Qh, Kh)
    count = mask.sum(axis=-1, keepdims=True).astype(jnp.float32)        # (B, S, 1)
    attn = jnp.where(mask[:, None],
                     jnp.maximum(scores, 0.0) * SCALE
                     / jnp.maximum(count, 1.0)[:, None],
                     0.0)
    ch = jnp.einsum('bhqk,bhck->bhcq', attn, Vh).reshape(B, U, S)
    return jnp.einsum('ou,bus->bos', w_out, ch)


if __name__ == "__main__":
    B, S = 2, 8
    key = jax.random.PRNGKey(0)
    kx, kqkv, kout = jax.random.split(key, 3)

    x = jax.random.normal(kx, (B, N_UNITS, S), dtype=jnp.float32)
    # Conv2d 1x1 with bias=False -> plain matrices.
    w_qkv = 0.1 * jax.random.normal(kqkv, (3 * N_UNITS, N_UNITS), dtype=jnp.float32)
    w_out = 0.1 * jax.random.normal(kout, (N_UNITS, N_UNITS), dtype=jnp.float32)

    # per-batch valid set sizes (batch 0 fully valid, batch 1 padded to length 5)
    lengths = jnp.array([8, 5], dtype=jnp.int32)

    out = multi_head_attention(x, lengths, w_qkv, w_out)
    out = jax.block_until_ready(out)

    # reference uses the equivalent outer-product mask, as in the PyTorch module
    pos = jnp.arange(S)
    valid = pos[None, :] < lengths[:, None]                     # (B, S)
    mask = valid[:, :, None] & valid[:, None, :]                # (B, S, S) bool
    ref = reference(x, mask, w_qkv, w_out)

    assert out.shape == (B, N_UNITS, S)
    # bf16 MXU operands (f32 accumulation) -> looser tolerance than a pure-f32 check.
    assert jnp.allclose(out, ref, rtol=5e-2, atol=3e-2), "mismatch vs reference"

    print("KERNEL_OK")
</pallas_src>

<mosaic_0001>
module attributes {stable_mosaic.version = 11 : i64} {
  func.func @kernel(%arg0: i32, %arg1: memref<1x16x32xf32, #tpu.memory_space<vmem>>, %arg2: memref<1x16x1xf32, #tpu.memory_space<vmem>>, %arg3: memref<1x16x1xf32, #tpu.memory_space<vmem>>, %arg4: memref<128x1xi32, #tpu.memory_space<vmem>>, %arg5: memref<1x128xi32, #tpu.memory_space<vmem>>, %arg6: memref<32x96xf32, #tpu.memory_space<vmem>>, %arg7: memref<32x32xf32, #tpu.memory_space<vmem>>, %arg8: memref<1x16x32xf32, #tpu.memory_space<vmem>>, %arg9: memref<3x128x4xf32, #tpu.memory_space<vmem>>, %arg10: memref<16x32xf32, #tpu.memory_space<vmem>>) attributes {dimension_semantics = [#tpu.dimension_semantics<parallel>], iteration_bounds = array<i64: 1>, scalar_prefetch = 0 : i64, scratch_operands = 2 : i64, tpu.core_type = #tpu.core_type<tc>, window_params = [{transform_indices = @transform_0, window_bounds = array<i64: 1, 16, 32>}, {transform_indices = @transform_1, window_bounds = array<i64: 1, 16, 1>}, {transform_indices = @transform_2, window_bounds = array<i64: 1, 16, 1>}, {pipeline_mode = #tpu.pipeline_mode<synchronous>, transform_indices = @transform_3, window_bounds = array<i64: 128, 1>}, {pipeline_mode = #tpu.pipeline_mode<synchronous>, transform_indices = @transform_4, window_bounds = array<i64: 1, 128>}, {pipeline_mode = #tpu.pipeline_mode<synchronous>, transform_indices = @transform_5, window_bounds = array<i64: 32, 96>}, {pipeline_mode = #tpu.pipeline_mode<synchronous>, transform_indices = @transform_6, window_bounds = array<i64: 32, 32>}, {transform_indices = @transform_7, window_bounds = array<i64: 1, 16, 32>}]} {
    %c0 = arith.constant 0 : index
    %c0_0 = arith.constant 0 : index
    %c0_1 = arith.constant 0 : index
    %0 = vector.load %arg1[%c0, %c0_0, %c0_1] : memref<1x16x32xf32, #tpu.memory_space<vmem>>, vector<1x16x32xf32>
    %1 = vector.shape_cast %0 : vector<1x16x32xf32> to vector<16x32xf32>
    %c0_2 = arith.constant 0 : index
    %c0_3 = arith.constant 0 : index
    %c0_4 = arith.constant 0 : index
    %2 = vector.load %arg2[%c0_2, %c0_3, %c0_4] : memref<1x16x1xf32, #tpu.memory_space<vmem>>, vector<1x16x1xf32>
    %3 = vector.shape_cast %2 : vector<1x16x1xf32> to vector<16x1xf32>
    %c0_5 = arith.constant 0 : index
    %c0_6 = arith.constant 0 : index
    %c0_7 = arith.constant 0 : index
    %4 = vector.load %arg3[%c0_5, %c0_6, %c0_7] : memref<1x16x1xf32, #tpu.memory_space<vmem>>, vector<1x16x1xf32>
    %5 = vector.shape_cast %4 : vector<1x16x1xf32> to vector<16x1xf32>
    %6 = vector.broadcast %3 : vector<16x1xf32> to vector<16x32xf32>
    %7 = arith.mulf %1, %6 : vector<16x32xf32>
    %8 = arith.truncf %7 : vector<16x32xf32> to vector<16x32xbf16>
    %c0_8 = arith.constant 0 : index
    %c0_9 = arith.constant 0 : index
    %9 = vector.load %arg6[%c0_8, %c0_9] : memref<32x96xf32, #tpu.memory_space<vmem>>, vector<32x96xf32>
    %10 = arith.truncf %9 : vector<32x96xf32> to vector<32x96xbf16>
    %cst = arith.constant dense<0.000000e+00> : vector<16x96xf32>
    %11 = tpu.matmul %8, %10, %cst {dimension_numbers = #tpu.dot_dimension_numbers<[1], [0], [0], [1], [0, 0, 1, 1], [], []>} : vector<16x32xbf16>, vector<32x96xbf16>, vector<16x96xf32> -> vector<16x96xf32>
    %12 = vector.extract_strided_slice %11 {offsets = [0, 0], sizes = [16, 4], strides = [1, 1]} : vector<16x96xf32> to vector<16x4xf32>
    %c0_10 = arith.constant 0 : index
    %c0_11 = arith.constant 0 : index
    %c0_12 = arith.constant 0 : index
    %13 = vector.load %arg9[%c0_10, %c0_11, %c0_12] : memref<3x128x4xf32, #tpu.memory_space<vmem>>, vector<1x16x4xf32>
    %14 = vector.shape_cast %13 : vector<1x16x4xf32> to vector<16x4xf32>
    %15 = vector.shape_cast %12 : vector<16x4xf32> to vector<1x16x4xf32>
    tpu.vector_store %arg9[%c0_10, %c0_11, %c0_12], %15 {strides = array<i32>} : memref<3x128x4xf32, #tpu.memory_space<vmem>>, vector<1x16x4xf32>,
    %16 = vector.extract_strided_slice %11 {offsets = [0, 4], sizes = [16, 4], strides = [1, 1]} : vector<16x96xf32> to vector<16x4xf32>
    %c0_13 = arith.constant 0 : index
    %c16 = arith.constant 16 : index
    %c0_14 = arith.constant 0 : index
    %17 = vector.load %arg9[%c0_13, %c16, %c0_14] : memref<3x128x4xf32, #tpu.memory_space<vmem>>, vector<1x16x4xf32>
    %18 = vector.shape_cast %17 : vector<1x16x4xf32> to vector<16x4xf32>
    %19 = vector.shape_cast %16 : vector<16x4xf32> to vector<1x16x4xf32>
    tpu.vector_store %arg9[%c0_13, %c16, %c0_14], %19 {strides = array<i32>} : memref<3x128x4xf32, #tpu.memory_space<vmem>>, vector<1x16x4xf32>,
    %20 = vector.extract_strided_slice %11 {offsets = [0, 8], sizes = [16, 4], strides = [1, 1]} : vector<16x96xf32> to vector<16x4xf32>
    %c0_15 = arith.constant 0 : index
    %c32 = arith.constant 32 : index
    %c0_16 = arith.constant 0 : index
    %21 = vector.load %arg9[%c0_15, %c32, %c0_16] : memref<3x128x4xf32, #tpu.memory_space<vmem>>, vector<1x16x4xf32>
    %22 = vector.shape_cast %21 : vector<1x16x4xf32> to vector<16x4xf32>
    %23 = vector.shape_cast %20 : vector<16x4xf32> to vector<1x16x4xf32>
    tpu.vector_store %arg9[%c0_15, %c32, %c0_16], %23 {strides = array<i32>} : memref<3x128x4xf32, #tpu.memory_space<vmem>>, vector<1x16x4xf32>,
    %24 = vector.extract_strided_slice %11 {offsets = [0, 12], sizes = [16, 4], strides = [1, 1]} : vector<16x96xf32> to vector<16x4xf32>
    %c0_17 = arith.constant 0 : index
    %c48 = arith.constant 48 : index
    %c0_18 = arith.constant 0 : index
    %25 = vector.load %arg9[%c0_17, %c48, %c0_18] : memref<3x128x4xf32, #tpu.memory_space<vmem>>, vector<1x16x4xf32>
    %26 = vector.shape_cast %25 : vector<1x16x4xf32> to vector<16x4xf32>
    %27 = vector.shape_cast %24 : vector<16x4xf32> to vector<1x16x4xf32>
    tpu.vector_store %arg9[%c0_17, %c48, %c0_18], %27 {strides = array<i32>} : memref<3x128x4xf32, #tpu.memory_space<vmem>>, vector<1x16x4xf32>,
    %28 = vector.extract_strided_slice %11 {offsets = [0, 16], sizes = [16, 4], strides = [1, 1]} : vector<16x96xf32> to vector<16x4xf32>
    %c0_19 = arith.constant 0 : index
    %c64 = arith.constant 64 : index
    %c0_20 = arith.constant 0 : index
    %29 = vector.load %arg9[%c0_19, %c64, %c0_20] : memref<3x128x4xf32, #tpu.memory_space<vmem>>, vector<1x16x4xf32>
    %30 = vector.shape_cast %29 : vector<1x16x4xf32> to vector<16x4xf32>
    %31 = vector.shape_cast %28 : vector<16x4xf32> to vector<1x16x4xf32>
    tpu.vector_store %arg9[%c0_19, %c64, %c0_20], %31 {strides = array<i32>} : memref<3x128x4xf32, #tpu.memory_space<vmem>>, vector<1x16x4xf32>,
    %32 = vector.extract_strided_slice %11 {offsets = [0, 20], sizes = [16, 4], strides = [1, 1]} : vector<16x96xf32> to vector<16x4xf32>
    %c0_21 = arith.constant 0 : index
    %c80 = arith.constant 80 : index
    %c0_22 = arith.constant 0 : index
    %33 = vector.load %arg9[%c0_21, %c80, %c0_22] : memref<3x128x4xf32, #tpu.memory_space<vmem>>, vector<1x16x4xf32>
    %34 = vector.shape_cast %33 : vector<1x16x4xf32> to vector<16x4xf32>
    %35 = vector.shape_cast %32 : vector<16x4xf32> to vector<1x16x4xf32>
    tpu.vector_store %arg9[%c0_21, %c80, %c0_22], %35 {strides = array<i32>} : memref<3x128x4xf32, #tpu.memory_space<vmem>>, vector<1x16x4xf32>,
    %36 = vector.extract_strided_slice %11 {offsets = [0, 24], sizes = [16, 4], strides = [1, 1]} : vector<16x96xf32> to vector<16x4xf32>
    %c0_23 = arith.constant 0 : index
    %c96 = arith.constant 96 : index
    %c0_24 = arith.constant 0 : index
    %37 = vector.load %arg9[%c0_23, %c96, %c0_24] : memref<3x128x4xf32, #tpu.memory_space<vmem>>, vector<1x16x4xf32>
    %38 = vector.shape_cast %37 : vector<1x16x4xf32> to vector<16x4xf32>
    %39 = vector.shape_cast %36 : vector<16x4xf32> to vector<1x16x4xf32>
    tpu.vector_store %arg9[%c0_23, %c96, %c0_24], %39 {strides = array<i32>} : memref<3x128x4xf32, #tpu.memory_space<vmem>>, vector<1x16x4xf32>,
    %40 = vector.extract_strided_slice %11 {offsets = [0, 28], sizes = [16, 4], strides = [1, 1]} : vector<16x96xf32> to vector<16x4xf32>
    %c0_25 = arith.constant 0 : index
    %c112 = arith.constant 112 : index
    %c0_26 = arith.constant 0 : index
    %41 = vector.load %arg9[%c0_25, %c112, %c0_26] : memref<3x128x4xf32, #tpu.memory_space<vmem>>, vector<1x16x4xf32>
    %42 = vector.shape_cast %41 : vector<1x16x4xf32> to vector<16x4xf32>
    %43 = vector.shape_cast %40 : vector<16x4xf32> to vector<1x16x4xf32>
    tpu.vector_store %arg9[%c0_25, %c112, %c0_26], %43 {strides = array<i32>} : memref<3x128x4xf32, #tpu.memory_space<vmem>>, vector<1x16x4xf32>,
    %44 = vector.extract_strided_slice %11 {offsets = [0, 32], sizes = [16, 4], strides = [1, 1]} : vector<16x96xf32> to vector<16x4xf32>
    %c1 = arith.constant 1 : index
    %c0_27 = arith.constant 0 : index
    %c0_28 = arith.constant 0 : index
    %45 = vector.load %arg9[%c1, %c0_27, %c0_28] : memref<3x128x4xf32, #tpu.memory_space<vmem>>, vector<1x16x4xf32>
    %46 = vector.shape_cast %45 : vector<1x16x4xf32> to vector<16x4xf32>
    %47 = vector.shape_cast %44 : vector<16x4xf32> to vector<1x16x4xf32>
    tpu.vector_store %arg9[%c1, %c0_27, %c0_28], %47 {strides = array<i32>} : memref<3x128x4xf32, #tpu.memory_space<vmem>>, vector<1x16x4xf32>,
    %48 = vector.extract_strided_slice %11 {offsets = [0, 36], sizes = [16, 4], strides = [1, 1]} : vector<16x96xf32> to vector<16x4xf32>
    %c1_29 = arith.constant 1 : index
    %c16_30 = arith.constant 16 : index
    %c0_31 = arith.constant 0 : index
    %49 = vector.load %arg9[%c1_29, %c16_30, %c0_31] : memref<3x128x4xf32, #tpu.memory_space<vmem>>, vector<1x16x4xf32>
    %50 = vector.shape_cast %49 : vector<1x16x4xf32> to vector<16x4xf32>
    %51 = vector.shape_cast %48 : vector<16x4xf32> to vector<1x16x4xf32>
    tpu.vector_store %arg9[%c1_29, %c16_30, %c0_31], %51 {strides = array<i32>} : memref<3x128x4xf32, #tpu.memory_space<vmem>>, vector<1x16x4xf32>,
    %52 = vector.extract_strided_slice %11 {offsets = [0, 40], sizes = [16, 4], strides = [1, 1]} : vector<16x96xf32> to vector<16x4xf32>
    %c1_32 = arith.constant 1 : index
    %c32_33 = arith.constant 32 : index
    %c0_34 = arith.constant 0 : index
    %53 = vector.load %arg9[%c1_32, %c32_33, %c0_34] : memref<3x128x4xf32, #tpu.memory_space<vmem>>, vector<1x16x4xf32>
    %54 = vector.shape_cast %53 : vector<1x16x4xf32> to vector<16x4xf32>
    %55 = vector.shape_cast %52 : vector<16x4xf32> to vector<1x16x4xf32>
    tpu.vector_store %arg9[%c1_32, %c32_33, %c0_34], %55 {strides = array<i32>} : memref<3x128x4xf32, #tpu.memory_space<vmem>>, vector<1x16x4xf32>,
    %56 = vector.extract_strided_slice %11 {offsets = [0, 44], sizes = [16, 4], strides = [1, 1]} : vector<16x96xf32> to vector<16x4xf32>
    %c1_35 = arith.constant 1 : index
    %c48_36 = arith.constant 48 : index
    %c0_37 = arith.constant 0 : index
    %57 = vector.load %arg9[%c1_35, %c48_36, %c0_37] : memref<3x128x4xf32, #tpu.memory_space<vmem>>, vector<1x16x4xf32>
    %58 = vector.shape_cast %57 : vector<1x16x4xf32> to vector<16x4xf32>
    %59 = vector.shape_cast %56 : vector<16x4xf32> to vector<1x16x4xf32>
    tpu.vector_store %arg9[%c1_35, %c48_36, %c0_37], %59 {strides = array<i32>} : memref<3x128x4xf32, #tpu.memory_space<vmem>>, vector<1x16x4xf32>,
    %60 = vector.extract_strided_slice %11 {offsets = [0, 48], sizes = [16, 4], strides = [1, 1]} : vector<16x96xf32> to vector<16x4xf32>
    %c1_38 = arith.constant 1 : index
    %c64_39 = arith.constant 64 : index
    %c0_40 = arith.constant 0 : index
    %61 = vector.load %arg9[%c1_38, %c64_39, %c0_40] : memref<3x128x4xf32, #tpu.memory_space<vmem>>, vector<1x16x4xf32>
    %62 = vector.shape_cast %61 : vector<1x16x4xf32> to vector<16x4xf32>
    %63 = vector.shape_cast %60 : vector<16x4xf32> to vector<1x16x4xf32>
    tpu.vector_store %arg9[%c1_38, %c64_39, %c0_40], %63 {strides = array<i32>} : memref<3x128x4xf32, #tpu.memory_space<vmem>>, vector<1x16x4xf32>,
    %64 = vector.extract_strided_slice %11 {offsets = [0, 52], sizes = [16, 4], strides = [1, 1]} : vector<16x96xf32> to vector<16x4xf32>
    %c1_41 = arith.constant 1 : index
    %c80_42 = arith.constant 80 : index
    %c0_43 = arith.constant 0 : index
    %65 = vector.load %arg9[%c1_41, %c80_42, %c0_43] : memref<3x128x4xf32, #tpu.memory_space<vmem>>, vector<1x16x4xf32>
    %66 = vector.shape_cast %65 : vector<1x16x4xf32> to vector<16x4xf32>
    %67 = vector.shape_cast %64 : vector<16x4xf32> to vector<1x16x4xf32>
    tpu.vector_store %arg9[%c1_41, %c80_42, %c0_43], %67 {strides = array<i32>} : memref<3x128x4xf32, #tpu.memory_space<vmem>>, vector<1x16x4xf32>,
    %68 = vector.extract_strided_slice %11 {offsets = [0, 56], sizes = [16, 4], strides = [1, 1]} : vector<16x96xf32> to vector<16x4xf32>
    %c1_44 = arith.constant 1 : index
    %c96_45 = arith.constant 96 : index
    %c0_46 = arith.constant 0 : index
    %69 = vector.load %arg9[%c1_44, %c96_45, %c0_46] : memref<3x128x4xf32, #tpu.memory_space<vmem>>, vector<1x16x4xf32>
    %70 = vector.shape_cast %69 : vector<1x16x4xf32> to vector<16x4xf32>
    %71 = vector.shape_cast %68 : vector<16x4xf32> to vector<1x16x4xf32>
    tpu.vector_store %arg9[%c1_44, %c96_45, %c0_46], %71 {strides = array<i32>} : memref<3x128x4xf32, #tpu.memory_space<vmem>>, vector<1x16x4xf32>,
    %72 = vector.extract_strided_slice %11 {offsets = [0, 60], sizes = [16, 4], strides = [1, 1]} : vector<16x96xf32> to vector<16x4xf32>
    %c1_47 = arith.constant 1 : index
    %c112_48 = arith.constant 112 : index
    %c0_49 = arith.constant 0 : index
    %73 = vector.load %arg9[%c1_47, %c112_48, %c0_49] : memref<3x128x4xf32, #tpu.memory_space<vmem>>, vector<1x16x4xf32>
    %74 = vector.shape_cast %73 : vector<1x16x4xf32> to vector<16x4xf32>
    %75 = vector.shape_cast %72 : vector<16x4xf32> to vector<1x16x4xf32>
    tpu.vector_store %arg9[%c1_47, %c112_48, %c0_49], %75 {strides = array<i32>} : memref<3x128x4xf32, #tpu.memory_space<vmem>>, vector<1x16x4xf32>,
    %76 = vector.extract_strided_slice %11 {offsets = [0, 64], sizes = [16, 4], strides = [1, 1]} : vector<16x96xf32> to vector<16x4xf32>
    %c2 = arith.constant 2 : index
    %c0_50 = arith.constant 0 : index
    %c0_51 = arith.constant 0 : index
    %77 = vector.load %arg9[%c2, %c0_50, %c0_51] : memref<3x128x4xf32, #tpu.memory_space<vmem>>, vector<1x16x4xf32>
    %78 = vector.shape_cast %77 : vector<1x16x4xf32> to vector<16x4xf32>
    %79 = vector.shape_cast %76 : vector<16x4xf32> to vector<1x16x4xf32>
    tpu.vector_store %arg9[%c2, %c0_50, %c0_51], %79 {strides = array<i32>} : memref<3x128x4xf32, #tpu.memory_space<vmem>>, vector<1x16x4xf32>,
    %80 = vector.extract_strided_slice %11 {offsets = [0, 68], sizes = [16, 4], strides = [1, 1]} : vector<16x96xf32> to vector<16x4xf32>
    %c2_52 = arith.constant 2 : index
    %c16_53 = arith.constant 16 : index
    %c0_54 = arith.constant 0 : index
    %81 = vector.load %arg9[%c2_52, %c16_53, %c0_54] : memref<3x128x4xf32, #tpu.memory_space<vmem>>, vector<1x16x4xf32>
    %82 = vector.shape_cast %81 : vector<1x16x4xf32> to vector<16x4xf32>
    %83 = vector.shape_cast %80 : vector<16x4xf32> to vector<1x16x4xf32>
    tpu.vector_store %arg9[%c2_52, %c16_53, %c0_54], %83 {strides = array<i32>} : memref<3x128x4xf32, #tpu.memory_space<vmem>>, vector<1x16x4xf32>,
    %84 = vector.extract_strided_slice %11 {offsets = [0, 72], sizes = [16, 4], strides = [1, 1]} : vector<16x96xf32> to vector<16x4xf32>
    %c2_55 = arith.constant 2 : index
    %c32_56 = arith.constant 32 : index
    %c0_57 = arith.constant 0 : index
    %85 = vector.load %arg9[%c2_55, %c32_56, %c0_57] : memref<3x128x4xf32, #tpu.memory_space<vmem>>, vector<1x16x4xf32>
    %86 = vector.shape_cast %85 : vector<1x16x4xf32> to vector<16x4xf32>
    %87 = vector.shape_cast %84 : vector<16x4xf32> to vector<1x16x4xf32>
    tpu.vector_store %arg9[%c2_55, %c32_56, %c0_57], %87 {strides = array<i32>} : memref<3x128x4xf32, #tpu.memory_space<vmem>>, vector<1x16x4xf32>,
    %88 = vector.extract_strided_slice %11 {offsets = [0, 76], sizes = [16, 4], strides = [1, 1]} : vector<16x96xf32> to vector<16x4xf32>
    %c2_58 = arith.constant 2 : index
    %c48_59 = arith.constant 48 : index
    %c0_60 = arith.constant 0 : index
    %89 = vector.load %arg9[%c2_58, %c48_59, %c0_60] : memref<3x128x4xf32, #tpu.memory_space<vmem>>, vector<1x16x4xf32>
    %90 = vector.shape_cast %89 : vector<1x16x4xf32> to vector<16x4xf32>
    %91 = vector.shape_cast %88 : vector<16x4xf32> to vector<1x16x4xf32>
    tpu.vector_store %arg9[%c2_58, %c48_59, %c0_60], %91 {strides = array<i32>} : memref<3x128x4xf32, #tpu.memory_space<vmem>>, vector<1x16x4xf32>,
    %92 = vector.extract_strided_slice %11 {offsets = [0, 80], sizes = [16, 4], strides = [1, 1]} : vector<16x96xf32> to vector<16x4xf32>
    %c2_61 = arith.constant 2 : index
    %c64_62 = arith.constant 64 : index
    %c0_63 = arith.constant 0 : index
    %93 = vector.load %arg9[%c2_61, %c64_62, %c0_63] : memref<3x128x4xf32, #tpu.memory_space<vmem>>, vector<1x16x4xf32>
    %94 = vector.shape_cast %93 : vector<1x16x4xf32> to vector<16x4xf32>
    %95 = vector.shape_cast %92 : vector<16x4xf32> to vector<1x16x4xf32>
    tpu.vector_store %arg9[%c2_61, %c64_62, %c0_63], %95 {strides = array<i32>} : memref<3x128x4xf32, #tpu.memory_space<vmem>>, vector<1x16x4xf32>,
    %96 = vector.extract_strided_slice %11 {offsets = [0, 84], sizes = [16, 4], strides = [1, 1]} : vector<16x96xf32> to vector<16x4xf32>
    %c2_64 = arith.constant 2 : index
    %c80_65 = arith.constant 80 : index
    %c0_66 = arith.constant 0 : index
    %97 = vector.load %arg9[%c2_64, %c80_65, %c0_66] : memref<3x128x4xf32, #tpu.memory_space<vmem>>, vector<1x16x4xf32>
    %98 = vector.shape_cast %97 : vector<1x16x4xf32> to vector<16x4xf32>
    %99 = vector.shape_cast %96 : vector<16x4xf32> to vector<1x16x4xf32>
    tpu.vector_store %arg9[%c2_64, %c80_65, %c0_66], %99 {strides = array<i32>} : memref<3x128x4xf32, #tpu.memory_space<vmem>>, vector<1x16x4xf32>,
    %100 = vector.extract_strided_slice %11 {offsets = [0, 88], sizes = [16, 4], strides = [1, 1]} : vector<16x96xf32> to vector<16x4xf32>
    %c2_67 = arith.constant 2 : index
    %c96_68 = arith.constant 96 : index
    %c0_69 = arith.constant 0 : index
    %101 = vector.load %arg9[%c2_67, %c96_68, %c0_69] : memref<3x128x4xf32, #tpu.memory_space<vmem>>, vector<1x16x4xf32>
    %102 = vector.shape_cast %101 : vector<1x16x4xf32> to vector<16x4xf32>
    %103 = vector.shape_cast %100 : vector<16x4xf32> to vector<1x16x4xf32>
    tpu.vector_store %arg9[%c2_67, %c96_68, %c0_69], %103 {strides = array<i32>} : memref<3x128x4xf32, #tpu.memory_space<vmem>>, vector<1x16x4xf32>,
    %104 = vector.extract_strided_slice %11 {offsets = [0, 92], sizes = [16, 4], strides = [1, 1]} : vector<16x96xf32> to vector<16x4xf32>
    %c2_70 = arith.constant 2 : index
    %c112_71 = arith.constant 112 : index
    %c0_72 = arith.constant 0 : index
    %105 = vector.load %arg9[%c2_70, %c112_71, %c0_72] : memref<3x128x4xf32, #tpu.memory_space<vmem>>, vector<1x16x4xf32>
    %106 = vector.shape_cast %105 : vector<1x16x4xf32> to vector<16x4xf32>
    %107 = vector.shape_cast %104 : vector<16x4xf32> to vector<1x16x4xf32>
    tpu.vector_store %arg9[%c2_70, %c112_71, %c0_72], %107 {strides = array<i32>} : memref<3x128x4xf32, #tpu.memory_space<vmem>>, vector<1x16x4xf32>,
    %c0_73 = arith.constant 0 : index
    %c0_74 = arith.constant 0 : index
    %c0_75 = arith.constant 0 : index
    %108 = vector.load %arg9[%c0_73, %c0_74, %c0_75] : memref<3x128x4xf32, #tpu.memory_space<vmem>>, vector<1x128x4xf32>
    %109 = vector.shape_cast %108 : vector<1x128x4xf32> to vector<128x4xf32>
    %c1_76 = arith.constant 1 : index
    %c0_77 = arith.constant 0 : index
    %c0_78 = arith.constant 0 : index
    %110 = vector.load %arg9[%c1_76, %c0_77, %c0_78] : memref<3x128x4xf32, #tpu.memory_space<vmem>>, vector<1x128x4xf32>
    %111 = vector.shape_cast %110 : vector<1x128x4xf32> to vector<128x4xf32>
    %c2_79 = arith.constant 2 : index
    %c0_80 = arith.constant 0 : index
    %c0_81 = arith.constant 0 : index
    %112 = vector.load %arg9[%c2_79, %c0_80, %c0_81] : memref<3x128x4xf32, #tpu.memory_space<vmem>>, vector<1x128x4xf32>
    %113 = vector.shape_cast %112 : vector<1x128x4xf32> to vector<128x4xf32>
    %114 = arith.truncf %109 : vector<128x4xf32> to vector<128x4xbf16>
    %115 = arith.truncf %111 : vector<128x4xf32> to vector<128x4xbf16>
    %cst_82 = arith.constant dense<0.000000e+00> : vector<128x128xf32>
    %116 = tpu.matmul %114, %115, %cst_82 {dimension_numbers = #tpu.dot_dimension_numbers<[1], [1], [0], [0], [0, 0, 1, 0], [], []>} : vector<128x4xbf16>, vector<128x4xbf16>, vector<128x128xf32> -> vector<128x128xf32>
    %c0_83 = arith.constant 0 : index
    %c0_84 = arith.constant 0 : index
    %117 = vector.load %arg4[%c0_83, %c0_84] : memref<128x1xi32, #tpu.memory_space<vmem>>, vector<128x1xi32>
    %c0_85 = arith.constant 0 : index
    %c0_86 = arith.constant 0 : index
    %118 = vector.load %arg5[%c0_85, %c0_86] : memref<1x128xi32, #tpu.memory_space<vmem>>, vector<1x128xi32>
    %119 = vector.broadcast %117 : vector<128x1xi32> to vector<128x128xi32>
    %120 = vector.broadcast %118 : vector<1x128xi32> to vector<128x128xi32>
    %121 = arith.cmpi eq, %119, %120 : vector<128x128xi32>
    %cst_87 = arith.constant 0.000000e+00 : f32
    %122 = vector.broadcast %cst_87 : f32 to vector<128x128xf32>
    %123 = arith.maximumf %116, %122 : vector<128x128xf32>
    %cst_88 = arith.constant 0.000000e+00 : f32
    %124 = vector.broadcast %cst_88 : f32 to vector<128x128xf32>
    %125 = arith.select %121, %123, %124 : vector<128x128xi1>, vector<128x128xf32>
    %126 = arith.truncf %125 : vector<128x128xf32> to vector<128x128xbf16>
    %127 = arith.truncf %113 : vector<128x4xf32> to vector<128x4xbf16>
    %cst_89 = arith.constant dense<0.000000e+00> : vector<128x4xf32>
    %128 = tpu.matmul %126, %127, %cst_89 {dimension_numbers = #tpu.dot_dimension_numbers<[1], [0], [0], [1], [0, 0, 1, 1], [], []>} : vector<128x128xbf16>, vector<128x4xbf16>, vector<128x4xf32> -> vector<128x4xf32>
    %129 = vector.extract_strided_slice %128 {offsets = [0, 0], sizes = [16, 4], strides = [1, 1]} : vector<128x4xf32> to vector<16x4xf32>
    %c0_90 = arith.constant 0 : index
    %c0_91 = arith.constant 0 : index
    %130 = vector.load %arg10[%c0_90, %c0_91] : memref<16x32xf32, #tpu.memory_space<vmem>>, vector<16x4xf32>
    tpu.vector_store %arg10[%c0_90, %c0_91], %129 {strides = array<i32>} : memref<16x32xf32, #tpu.memory_space<vmem>>, vector<16x4xf32>,
    %131 = vector.extract_strided_slice %128 {offsets = [16, 0], sizes = [16, 4], strides = [1, 1]} : vector<128x4xf32> to vector<16x4xf32>
    %c0_92 = arith.constant 0 : index
    %c4 = arith.constant 4 : index
    %132 = vector.load %arg10[%c0_92, %c4] : memref<16x32xf32, #tpu.memory_space<vmem>>, vector<16x4xf32>
    tpu.vector_store %arg10[%c0_92, %c4], %131 {strides = array<i32>} : memref<16x32xf32, #tpu.memory_space<vmem>>, vector<16x4xf32>,
    %133 = vector.extract_strided_slice %128 {offsets = [32, 0], sizes = [16, 4], strides = [1, 1]} : vector<128x4xf32> to vector<16x4xf32>
    %c0_93 = arith.constant 0 : index
    %c8 = arith.constant 8 : index
    %134 = vector.load %arg10[%c0_93, %c8] : memref<16x32xf32, #tpu.memory_space<vmem>>, vector<16x4xf32>
    tpu.vector_store %arg10[%c0_93, %c8], %133 {strides = array<i32>} : memref<16x32xf32, #tpu.memory_space<vmem>>, vector<16x4xf32>,
    %135 = vector.extract_strided_slice %128 {offsets = [48, 0], sizes = [16, 4], strides = [1, 1]} : vector<128x4xf32> to vector<16x4xf32>
    %c0_94 = arith.constant 0 : index
    %c12 = arith.constant 12 : index
    %136 = vector.load %arg10[%c0_94, %c12] : memref<16x32xf32, #tpu.memory_space<vmem>>, vector<16x4xf32>
    tpu.vector_store %arg10[%c0_94, %c12], %135 {strides = array<i32>} : memref<16x32xf32, #tpu.memory_space<vmem>>, vector<16x4xf32>,
    %137 = vector.extract_strided_slice %128 {offsets = [64, 0], sizes = [16, 4], strides = [1, 1]} : vector<128x4xf32> to vector<16x4xf32>
    %c0_95 = arith.constant 0 : index
    %c16_96 = arith.constant 16 : index
    %138 = vector.load %arg10[%c0_95, %c16_96] : memref<16x32xf32, #tpu.memory_space<vmem>>, vector<16x4xf32>
    tpu.vector_store %arg10[%c0_95, %c16_96], %137 {strides = array<i32>} : memref<16x32xf32, #tpu.memory_space<vmem>>, vector<16x4xf32>,
    %139 = vector.extract_strided_slice %128 {offsets = [80, 0], sizes = [16, 4], strides = [1, 1]} : vector<128x4xf32> to vector<16x4xf32>
    %c0_97 = arith.constant 0 : index
    %c20 = arith.constant 20 : index
    %140 = vector.load %arg10[%c0_97, %c20] : memref<16x32xf32, #tpu.memory_space<vmem>>, vector<16x4xf32>
    tpu.vector_store %arg10[%c0_97, %c20], %139 {strides = array<i32>} : memref<16x32xf32, #tpu.memory_space<vmem>>, vector<16x4xf32>,
    %141 = vector.extract_strided_slice %128 {offsets = [96, 0], sizes = [16, 4], strides = [1, 1]} : vector<128x4xf32> to vector<16x4xf32>
    %c0_98 = arith.constant 0 : index
    %c24 = arith.constant 24 : index
    %142 = vector.load %arg10[%c0_98, %c24] : memref<16x32xf32, #tpu.memory_space<vmem>>, vector<16x4xf32>
    tpu.vector_store %arg10[%c0_98, %c24], %141 {strides = array<i32>} : memref<16x32xf32, #tpu.memory_space<vmem>>, vector<16x4xf32>,
    %143 = vector.extract_strided_slice %128 {offsets = [112, 0], sizes = [16, 4], strides = [1, 1]} : vector<128x4xf32> to vector<16x4xf32>
    %c0_99 = arith.constant 0 : index
    %c28 = arith.constant 28 : index
    %144 = vector.load %arg10[%c0_99, %c28] : memref<16x32xf32, #tpu.memory_space<vmem>>, vector<16x4xf32>
    tpu.vector_store %arg10[%c0_99, %c28], %143 {strides = array<i32>} : memref<16x32xf32, #tpu.memory_space<vmem>>, vector<16x4xf32>,
    %c0_100 = arith.constant 0 : index
    %c0_101 = arith.constant 0 : index
    %145 = vector.load %arg7[%c0_100, %c0_101] : memref<32x32xf32, #tpu.memory_space<vmem>>, vector<32x32xf32>
    %146 = arith.truncf %145 : vector<32x32xf32> to vector<32x32xbf16>
    %c0_102 = arith.constant 0 : index
    %c0_103 = arith.constant 0 : index
    %147 = vector.load %arg10[%c0_102, %c0_103] : memref<16x32xf32, #tpu.memory_space<vmem>>, vector<16x32xf32>
    %148 = arith.truncf %147 : vector<16x32xf32> to vector<16x32xbf16>
    %cst_104 = arith.constant dense<0.000000e+00> : vector<16x32xf32>
    %149 = tpu.matmul %148, %146, %cst_104 {dimension_numbers = #tpu.dot_dimension_numbers<[1], [0], [0], [1], [0, 0, 1, 1], [], []>} : vector<16x32xbf16>, vector<32x32xbf16>, vector<16x32xf32> -> vector<16x32xf32>
    %150 = vector.broadcast %5 : vector<16x1xf32> to vector<16x32xf32>
    %151 = arith.mulf %149, %150 : vector<16x32xf32>
    %c0_105 = arith.constant 0 : index
    %c0_106 = arith.constant 0 : index
    %c0_107 = arith.constant 0 : index
    %152 = vector.load %arg8[%c0_105, %c0_106, %c0_107] : memref<1x16x32xf32, #tpu.memory_space<vmem>>, vector<1x16x32xf32>
    %153 = vector.shape_cast %152 : vector<1x16x32xf32> to vector<16x32xf32>
    %154 = vector.shape_cast %151 : vector<16x32xf32> to vector<1x16x32xf32>
    tpu.vector_store %arg8[%c0_105, %c0_106, %c0_107], %154 {strides = array<i32>} : memref<1x16x32xf32, #tpu.memory_space<vmem>>, vector<1x16x32xf32>,
    return
  }
  func.func @transform_0(%arg0: i32) -> (i32, i32, i32) {
    %c0_i32 = arith.constant 0 : i32
    %c0_i32_0 = arith.constant 0 : i32
    %c0_i32_1 = arith.constant 0 : i32
    return %arg0, %c0_i32, %c0_i32_0 : i32, i32, i32
  }
  func.func @transform_1(%arg0: i32) -> (i32, i32, i32) {
    %c0_i32 = arith.constant 0 : i32
    %c0_i32_0 = arith.constant 0 : i32
    %c0_i32_1 = arith.constant 0 : i32
    return %arg0, %c0_i32, %c0_i32_0 : i32, i32, i32
  }
  func.func @transform_2(%arg0: i32) -> (i32, i32, i32) {
    %c0_i32 = arith.constant 0 : i32
    %c0_i32_0 = arith.constant 0 : i32
    %c0_i32_1 = arith.constant 0 : i32
    return %arg0, %c0_i32, %c0_i32_0 : i32, i32, i32
  }
  func.func @transform_3(%arg0: i32) -> (i32, i32) {
    %c0_i32 = arith.constant 0 : i32
    %c0_i32_0 = arith.constant 0 : i32
    %c0_i32_1 = arith.constant 0 : i32
    return %c0_i32, %c0_i32_0 : i32, i32
  }
  func.func @transform_4(%arg0: i32) -> (i32, i32) {
    %c0_i32 = arith.constant 0 : i32
    %c0_i32_0 = arith.constant 0 : i32
    %c0_i32_1 = arith.constant 0 : i32
    return %c0_i32, %c0_i32_0 : i32, i32
  }
  func.func @transform_5(%arg0: i32) -> (i32, i32) {
    %c0_i32 = arith.constant 0 : i32
    %c0_i32_0 = arith.constant 0 : i32
    %c0_i32_1 = arith.constant 0 : i32
    return %c0_i32, %c0_i32_0 : i32, i32
  }
  func.func @transform_6(%arg0: i32) -> (i32, i32) {
    %c0_i32 = arith.constant 0 : i32
    %c0_i32_0 = arith.constant 0 : i32
    %c0_i32_1 = arith.constant 0 : i32
    return %c0_i32, %c0_i32_0 : i32, i32
  }
  func.func @transform_7(%arg0: i32) -> (i32, i32, i32) {
    %c0_i32 = arith.constant 0 : i32
    %c0_i32_0 = arith.constant 0 : i32
    %c0_i32_1 = arith.constant 0 : i32
    return %arg0, %c0_i32, %c0_i32_0 : i32, i32, i32
  }
}

</mosaic_0001>

<llo_original>
// kernel: tpu_custom_call.1
$region0: #{tpu_custom_call.1}
  #allocation0 [shape = 'u32[]', space=smem, size = 0x4, offset = 0x4, fixed_abs, tag = 'smem constant byte address 0x4 - core index']
  #allocation1 [shape = 'u32[144,128]{1,0:T(1,128)}', space=vmem, size = 0x12000, scoped, tag = 'internal scratch']
  #allocation2 [shape = 'f32[3,128,4]{2,1,0:T(8,128)}', space=vmem, size = 0x30000, scoped, tag = 'scratch operand']
  #allocation3 [shape = 'f32[16,32]{1,0:T(8,128)}', space=vmem, size = 0x2000, scoped, tag = 'scratch operand']
  %s0 = inlined_call_operand.vmem [shape: f32[1,16,32], index: 0, kind: input, shape index: {}]
  %s1 = inlined_call_operand.vmem [shape: f32[1,16,1], index: 1, kind: input, shape index: {}]
  %s2 = inlined_call_operand.vmem [shape: f32[1,16,1], index: 2, kind: input, shape index: {}]
  %s3 = inlined_call_operand.vmem [shape: s32[128,1], index: 3, kind: input, shape index: {}]
  %s4 = inlined_call_operand.vmem [shape: s32[1,128], index: 4, kind: input, shape index: {}]
  %s5 = inlined_call_operand.vmem [shape: f32[32,96], index: 5, kind: input, shape index: {}]
  %s6 = inlined_call_operand.vmem [shape: f32[32,32], index: 6, kind: input, shape index: {}]
  %s7 = inlined_call_operand.hbm [shape: f32[1,16,32], index: 7, kind: output, shape index: {}]
  %s8 = sld [smem:[#allocation0]]
  $region38: #{tpu_custom_call.1} parent=0
    _
  %s10 = ssub.s32 1, %s8
  %s11 = scalar_select 0, %s10, %s8
  $region1: #{tpu_custom_call.1} parent=0
    #allocation4 [shape = 'u8[8192]{0}', space=vmem, size = 0x2000, scoped, tag = 'output window, operand 0, single buffered']
    #allocation5 [shape = 's32[1]{0}', space=sflag, size = 0x4, scoped, tag = 'scoped memory for tpu_custom_call.1']
    %12 = vsyncpa [#allocation5], 0
    // Predicated region
    $region2: #{tpu_custom_call.1} parent=1 // pred_check
      _
    $region3: #{tpu_custom_call.1} parent=1 // pred_check_branch
      %14 = sbr.rel (0) target = $region5
    $region4: #{tpu_custom_call.1} parent=1 // pred_region
      _
    $region5: #{tpu_custom_call.1} parent=1 // pred_fallthru
      _
    // Predicated region
    $region6: #{tpu_custom_call.1} parent=1 // pred_check
      _
    $region7: #{tpu_custom_call.1} parent=1 // pred_check_branch
      %16 = sbr.rel (0) target = $region9
    $region8: #{tpu_custom_call.1} parent=1 // pred_region
      _
    $region9: #{tpu_custom_call.1} parent=1 // pred_fallthru
      _
    // Predicated region
    $region10: #{tpu_custom_call.1} parent=1 // pred_check
      _
    $region11: #{tpu_custom_call.1} parent=1 // pred_check_branch
      %18 = sbr.rel (0) target = $region13
    $region12: #{tpu_custom_call.1} parent=1 // pred_region
      _
    $region13: #{tpu_custom_call.1} parent=1 // pred_fallthru
      _
    // Predicated region
    $region14: #{tpu_custom_call.1} parent=1 // pred_check
      _
    $region15: #{tpu_custom_call.1} parent=1 // pred_check_branch
      %20 = sbr.rel (0) target = $region17
    $region16: #{tpu_custom_call.1} parent=1 // pred_region
      _
    $region17: #{tpu_custom_call.1} parent=1 // pred_fallthru
      _
    // Predicated region
    $region18: #{tpu_custom_call.1} parent=1 // pred_check
      _
    $region19: #{tpu_custom_call.1} parent=1 // pred_check_branch
      %22 = sbr.rel (0) target = $region21
    $region20: #{tpu_custom_call.1} parent=1 // pred_region
      _
    $region21: #{tpu_custom_call.1} parent=1 // pred_fallthru
      _
    // Predicated region
    $region22: #{tpu_custom_call.1} parent=1 // pred_check
      _
    $region23: #{tpu_custom_call.1} parent=1 // pred_check_branch
      %24 = sbr.rel (0) target = $region25
    $region24: #{tpu_custom_call.1} parent=1 // pred_region
      _
    $region25: #{tpu_custom_call.1} parent=1 // pred_fallthru
      _
    // Predicated region
    $region26: #{tpu_custom_call.1} parent=1 // pred_check
      _
    $region27: #{tpu_custom_call.1} parent=1 // pred_check_branch
      %26 = sbr.rel (0) target = $region29
    $region28: #{tpu_custom_call.1} parent=1 // pred_region
      _
    $region29: #{tpu_custom_call.1} parent=1 // pred_fallthru
      _
    %v28 = vld [vmem:[%s0] sm:$0xff]
    %v29 = vld [vmem:[%s0 + $0x8] sm:$0xff]
    %v30 = vld [vmem:[%s1] sm:$0xff]
    %v31 = vld [vmem:[%s1 + $0x8] sm:$0xff]
    %v32 = vld [vmem:[%s2] sm:$0xff]
    %v33 = vld [vmem:[%s2 + $0x8] sm:$0xff]
    %35 = vset.pattern.permute.xlu0 0
    %36 = vperm.xlu0 %35, %v30
    %v37 = vpop.permute.xlu0 %36
    %40 = vset.pattern.permute.xlu0 0
    %41 = vperm.xlu0 %40, %v31
    %v42 = vpop.permute.xlu0 %41
    %v44 = vmul.f32 %v28, %v37
    %v45 = vmul.f32 %v29, %v42
    %v46 = vpack.c.bf16 %v45, %v44
    %v47 = vld [vmem:[%s5] sm:$0xff]
    %v48 = vld [vmem:[%s5 + $0x8] sm:$0xff]
    %v49 = vld [vmem:[%s5 + $0x10] sm:$0xff]
    %v50 = vld [vmem:[%s5 + $0x18] sm:$0xff]
    %v51 = vpack.c.bf16 %v48, %v47
    %v52 = vpack.c.bf16 %v50, %v49
    %vm53 = vcmask 261120
    %v55 = vsel %vm53, %v46, 0
    %57 = vmatprep.subr.bf16.mxu0 0
    %58 = vmatpush1.bf16.msra.mxu0 0
    %59 = vmatprep.subr.bf16.mxu0 0
    %60 = vmatpush1.bf16.msra.mxu0 0
    %61 = vmatprep.subr.bf16.mxu0 0
    %62 = vmatpush1.bf16.msra.mxu0 0
    %63 = vmatprep.subr.bf16.mxu0 0
    %64 = vmatpush1.bf16.msra.mxu0 0
    %65 = vmatprep.subr.bf16.mxu0 0
    %66 = vmatpush1.bf16.msra.mxu0 0
    %67 = vmatprep.subr.bf16.mxu0 0
    %68 = vmatpush1.bf16.msra.mxu0 0
    %69 = vmatprep.subr.bf16.mxu0 0
    %70 = vmatpush1.bf16.msra.mxu0 %v52
    %71 = vmatprep.subr.bf16.mxu0 0
    %72 = vmatpush1.bf16.msra.mxu0 %v51
    %73 = vmatprep.subr.bf16.mxu0 0
    %74 = vmatpush2.bf16.msra.mxu0 0
    %75 = vmatprep.subr.bf16.mxu0 0
    %76 = vmatpush2.bf16.msra.mxu0 0
    %77 = vmatprep.subr.bf16.mxu0 0
    %78 = vmatpush2.bf16.msra.mxu0 0
    %79 = vmatprep.subr.bf16.mxu0 0
    %80 = vmatpush2.bf16.msra.mxu0 0
    %81 = vmatprep.subr.bf16.mxu0 0
    %82 = vmatpush2.bf16.msra.mxu0 0
    %83 = vmatprep.subr.bf16.mxu0 0
    %84 = vmatpush2.bf16.msra.mxu0 0
    %85 = vmatprep.subr.bf16.mxu0 0
    %86 = vmatpush2.bf16.msra.mxu0 0
    %87 = vmatprep.subr.bf16.mxu0 0
    %88 = vmatpush2.bf16.msra.mxu0 0
    %89 = vmatprep.mubr.bf16.mxu0 0
    %90 = vmatmul.mubr.bf16.gmra.mxu0 %v55
    %v91 = vpop.f32.mrf.mxu0
    %v92 = vadd.f32 0.0, %v91
    %v93 = vpop.f32.mrf.mxu0
    %v94 = vpop.f32.mrf.mxu0
    %v95 = vadd.f32 0.0, %v94
    %v96 = vpop.f32.mrf.mxu0
    %97 = vdwg.mxu0
    %vm98 = vcmask 31744
    %99 = vst.msk [vmem:[#allocation2] sm:$0xff] %vm98, %v92
    %100 = vst.msk [vmem:[#allocation2 + $0x8] sm:$0xff] %vm98, %v95
    %103 = vrot.lane.b32.xlu0 %v92, 124
    %v104 = vpop.permute.xlu0 %103
    %105 = vrot.lane.b32.xlu0 %v95, 124
    %v106 = vpop.permute.xlu0 %105
    %109 = vst.msk [vmem:[#allocation2 + $0x10] sm:$0xff] %vm98, %v104
    %110 = vst.msk [vmem:[#allocation2 + $0x18] sm:$0xff] %vm98, %v106
    %111 = vrot.lane.b32.xlu0 %v92, 120
    %v112 = vpop.permute.xlu0 %111
    %113 = vrot.lane.b32.xlu0 %v95, 120
    %v114 = vpop.permute.xlu0 %113
    %117 = vst.msk [vmem:[#allocation2 + $0x20] sm:$0xff] %vm98, %v112
    %118 = vst.msk [vmem:[#allocation2 + $0x28] sm:$0xff] %vm98, %v114
    %119 = vrot.lane.b32.xlu0 %v92, 116
    %v120 = vpop.permute.xlu0 %119
    %121 = vrot.lane.b32.xlu0 %v95, 116
    %v122 = vpop.permute.xlu0 %121
    %125 = vst.msk [vmem:[#allocation2 + $0x30] sm:$0xff] %vm98, %v120
    %126 = vst.msk [vmem:[#allocation2 + $0x38] sm:$0xff] %vm98, %v122
    %127 = vrot.lane.b32.xlu0 %v92, 112
    %v128 = vpop.permute.xlu0 %127
    %129 = vrot.lane.b32.xlu0 %v95, 112
    %v130 = vpop.permute.xlu0 %129
    %133 = vst.msk [vmem:[#allocation2 + $0x40] sm:$0xff] %vm98, %v128
    %134 = vst.msk [vmem:[#allocation2 + $0x48] sm:$0xff] %vm98, %v130
    %135 = vrot.lane.b32.xlu0 %v92, 108
    %v136 = vpop.permute.xlu0 %135
    %137 = vrot.lane.b32.xlu0 %v95, 108
    %v138 = vpop.permute.xlu0 %137
    %141 = vst.msk [vmem:[#allocation2 + $0x50] sm:$0xff] %vm98, %v136
    %142 = vst.msk [vmem:[#allocation2 + $0x58] sm:$0xff] %vm98, %v138
    %143 = vrot.lane.b32.xlu0 %v92, 104
    %v144 = vpop.permute.xlu0 %143
    %145 = vrot.lane.b32.xlu0 %v95, 104
    %v146 = vpop.permute.xlu0 %145
    %149 = vst.msk [vmem:[#allocation2 + $0x60] sm:$0xff] %vm98, %v144
    %150 = vst.msk [vmem:[#allocation2 + $0x68] sm:$0xff] %vm98, %v146
    %151 = vrot.lane.b32.xlu0 %v92, 100
    %v152 = vpop.permute.xlu0 %151
    %153 = vrot.lane.b32.xlu0 %v95, 100
    %v154 = vpop.permute.xlu0 %153
    %157 = vst.msk [vmem:[#allocation2 + $0x70] sm:$0xff] %vm98, %v152
    %158 = vst.msk [vmem:[#allocation2 + $0x78] sm:$0xff] %vm98, %v154
    %159 = vrot.lane.b32.xlu0 %v92, 96
    %v160 = vpop.permute.xlu0 %159
    %161 = vrot.lane.b32.xlu0 %v95, 96
    %v162 = vpop.permute.xlu0 %161
    %s165 = scalar_lea.vmem [#allocation2], 128
    %166 = vst.msk [vmem:[%s165] sm:$0xff] %vm98, %v160
    %167 = vst.msk [vmem:[%s165 + $0x8] sm:$0xff] %vm98, %v162
    %168 = vrot.lane.b32.xlu0 %v92, 92
    %v169 = vpop.permute.xlu0 %168
    %170 = vrot.lane.b32.xlu0 %v95, 92
    %v171 = vpop.permute.xlu0 %170
    %174 = vst.msk [vmem:[%s165 + $0x10] sm:$0xff] %vm98, %v169
    %175 = vst.msk [vmem:[%s165 + $0x18] sm:$0xff] %vm98, %v171
    %176 = vrot.lane.b32.xlu0 %v92, 88
    %v177 = vpop.permute.xlu0 %176
    %178 = vrot.lane.b32.xlu0 %v95, 88
    %v179 = vpop.permute.xlu0 %178
    %182 = vst.msk [vmem:[%s165 + $0x20] sm:$0xff] %vm98, %v177
    %183 = vst.msk [vmem:[%s165 + $0x28] sm:$0xff] %vm98, %v179
    %184 = vrot.lane.b32.xlu0 %v92, 84
    %v185 = vpop.permute.xlu0 %184
    %186 = vrot.lane.b32.xlu0 %v95, 84
    %v187 = vpop.permute.xlu0 %186
    %190 = vst.msk [vmem:[%s165 + $0x30] sm:$0xff] %vm98, %v185
    %191 = vst.msk [vmem:[%s165 + $0x38] sm:$0xff] %vm98, %v187
    %192 = vrot.lane.b32.xlu0 %v92, 80
    %v193 = vpop.permute.xlu0 %192
    %194 = vrot.lane.b32.xlu0 %v95, 80
    %v195 = vpop.permute.xlu0 %194
    %198 = vst.msk [vmem:[%s165 + $0x40] sm:$0xff] %vm98, %v193
    %199 = vst.msk [vmem:[%s165 + $0x48] sm:$0xff] %vm98, %v195
    %200 = vrot.lane.b32.xlu0 %v92, 76
    %v201 = vpop.permute.xlu0 %200
    %202 = vrot.lane.b32.xlu0 %v95, 76
    %v203 = vpop.permute.xlu0 %202
    %206 = vst.msk [vmem:[%s165 + $0x50] sm:$0xff] %vm98, %v201
    %207 = vst.msk [vmem:[%s165 + $0x58] sm:$0xff] %vm98, %v203
    %208 = vrot.lane.b32.xlu0 %v92, 72
    %v209 = vpop.permute.xlu0 %208
    %210 = vrot.lane.b32.xlu0 %v95, 72
    %v211 = vpop.permute.xlu0 %210
    %214 = vst.msk [vmem:[%s165 + $0x60] sm:$0xff] %vm98, %v209
    %215 = vst.msk [vmem:[%s165 + $0x68] sm:$0xff] %vm98, %v211
    %216 = vrot.lane.b32.xlu0 %v92, 68
    %v217 = vpop.permute.xlu0 %216
    %218 = vrot.lane.b32.xlu0 %v95, 68
    %v219 = vpop.permute.xlu0 %218
    %222 = vst.msk [vmem:[%s165 + $0x70] sm:$0xff] %vm98, %v217
    %223 = vst.msk [vmem:[%s165 + $0x78] sm:$0xff] %vm98, %v219
    %224 = vrot.lane.b32.xlu0 %v92, 64
    %v225 = vpop.permute.xlu0 %224
    %226 = vrot.lane.b32.xlu0 %v95, 64
    %v227 = vpop.permute.xlu0 %226
    %s230 = scalar_lea.vmem [#allocation2], 256
    %231 = vst.msk [vmem:[%s230] sm:$0xff] %vm98, %v225
    %232 = vst.msk [vmem:[%s230 + $0x8] sm:$0xff] %vm98, %v227
    %233 = vrot.lane.b32.xlu0 %v92, 60
    %v234 = vpop.permute.xlu0 %233
    %235 = vrot.lane.b32.xlu0 %v95, 60
    %v236 = vpop.permute.xlu0 %235
    %239 = vst.msk [vmem:[%s230 + $0x10] sm:$0xff] %vm98, %v234
    %240 = vst.msk [vmem:[%s230 + $0x18] sm:$0xff] %vm98, %v236
    %241 = vrot.lane.b32.xlu0 %v92, 56
    %v242 = vpop.permute.xlu0 %241
    %243 = vrot.lane.b32.xlu0 %v95, 56
    %v244 = vpop.permute.xlu0 %243
    %247 = vst.msk [vmem:[%s230 + $0x20] sm:$0xff] %vm98, %v242
    %248 = vst.msk [vmem:[%s230 + $0x28] sm:$0xff] %vm98, %v244
    %249 = vrot.lane.b32.xlu0 %v92, 52
    %v250 = vpop.permute.xlu0 %249
    %251 = vrot.lane.b32.xlu0 %v95, 52
    %v252 = vpop.permute.xlu0 %251
    %255 = vst.msk [vmem:[%s230 + $0x30] sm:$0xff] %vm98, %v250
    %256 = vst.msk [vmem:[%s230 + $0x38] sm:$0xff] %vm98, %v252
    %257 = vrot.lane.b32.xlu0 %v92, 48
    %v258 = vpop.permute.xlu0 %257
    %259 = vrot.lane.b32.xlu0 %v95, 48
    %v260 = vpop.permute.xlu0 %259
    %263 = vst.msk [vmem:[%s230 + $0x40] sm:$0xff] %vm98, %v258
    %264 = vst.msk [vmem:[%s230 + $0x48] sm:$0xff] %vm98, %v260
    %265 = vrot.lane.b32.xlu0 %v92, 44
    %v266 = vpop.permute.xlu0 %265
    %267 = vrot.lane.b32.xlu0 %v95, 44
    %v268 = vpop.permute.xlu0 %267
    %271 = vst.msk [vmem:[%s230 + $0x50] sm:$0xff] %vm98, %v266
    %272 = vst.msk [vmem:[%s230 + $0x58] sm:$0xff] %vm98, %v268
    %273 = vrot.lane.b32.xlu0 %v92, 40
    %v274 = vpop.permute.xlu0 %273
    %275 = vrot.lane.b32.xlu0 %v95, 40
    %v276 = vpop.permute.xlu0 %275
    %279 = vst.msk [vmem:[%s230 + $0x60] sm:$0xff] %vm98, %v274
    %280 = vst.msk [vmem:[%s230 + $0x68] sm:$0xff] %vm98, %v276
    %281 = vrot.lane.b32.xlu0 %v92, 36
    %v282 = vpop.permute.xlu0 %281
    %283 = vrot.lane.b32.xlu0 %v95, 36
    %v284 = vpop.permute.xlu0 %283
    %287 = vst.msk [vmem:[%s230 + $0x70] sm:$0xff] %vm98, %v282
    %288 = vst.msk [vmem:[%s230 + $0x78] sm:$0xff] %vm98, %v284
    %v289 = vld [vmem:[#allocation2] sm:$0xff]
    %v290 = vld [vmem:[#allocation2 + $0x8] sm:$0xff]
    %v291 = vld [vmem:[#allocation2 + $0x10] sm:$0xff]
    %v292 = vld [vmem:[#allocation2 + $0x18] sm:$0xff]
    %v293 = vld [vmem:[#allocation2 + $0x20] sm:$0xff]
    %v294 = vld [vmem:[#allocation2 + $0x28] sm:$0xff]
    %v295 = vld [vmem:[#allocation2 + $0x30] sm:$0xff]
    %v296 = vld [vmem:[#allocation2 + $0x38] sm:$0xff]
    %v297 = vld [vmem:[#allocation2 + $0x40] sm:$0xff]
    %v298 = vld [vmem:[#allocation2 + $0x48] sm:$0xff]
    %v299 = vld [vmem:[#allocation2 + $0x50] sm:$0xff]
    %v300 = vld [vmem:[#allocation2 + $0x58] sm:$0xff]
    %v301 = vld [vmem:[#allocation2 + $0x60] sm:$0xff]
    %v302 = vld [vmem:[#allocation2 + $0x68] sm:$0xff]
    %v303 = vld [vmem:[#allocation2 + $0x70] sm:$0xff]
    %v304 = vld [vmem:[#allocation2 + $0x78] sm:$0xff]
    %v305 = vld [vmem:[%s165] sm:$0xff]
    %v306 = vld [vmem:[%s165 + $0x8] sm:$0xff]
    %v307 = vld [vmem:[%s165 + $0x10] sm:$0xff]
    %v308 = vld [vmem:[%s165 + $0x18] sm:$0xff]
    %v309 = vld [vmem:[%s165 + $0x20] sm:$0xff]
    %v310 = vld [vmem:[%s165 + $0x28] sm:$0xff]
    %v311 = vld [vmem:[%s165 + $0x30] sm:$0xff]
    %v312 = vld [vmem:[%s165 + $0x38] sm:$0xff]
    %v313 = vld [vmem:[%s165 + $0x40] sm:$0xff]
    %v314 = vld [vmem:[%s165 + $0x48] sm:$0xff]
    %v315 = vld [vmem:[%s165 + $0x50] sm:$0xff]
    %v316 = vld [vmem:[%s165 + $0x58] sm:$0xff]
    %v317 = vld [vmem:[%s165 + $0x60] sm:$0xff]
    %v318 = vld [vmem:[%s165 + $0x68] sm:$0xff]
    %v319 = vld [vmem:[%s165 + $0x70] sm:$0xff]
    %v320 = vld [vmem:[%s165 + $0x78] sm:$0xff]
    %v321 = vld [vmem:[%s230] sm:$0xff]
    %v322 = vld [vmem:[%s230 + $0x8] sm:$0xff]
    %v323 = vld [vmem:[%s230 + $0x10] sm:$0xff]
    %v324 = vld [vmem:[%s230 + $0x18] sm:$0xff]
    %v325 = vld [vmem:[%s230 + $0x20] sm:$0xff]
    %v326 = vld [vmem:[%s230 + $0x28] sm:$0xff]
    %v327 = vld [vmem:[%s230 + $0x30] sm:$0xff]
    %v328 = vld [vmem:[%s230 + $0x38] sm:$0xff]
    %v329 = vld [vmem:[%s230 + $0x40] sm:$0xff]
    %v330 = vld [vmem:[%s230 + $0x48] sm:$0xff]
    %v331 = vld [vmem:[%s230 + $0x50] sm:$0xff]
    %v332 = vld [vmem:[%s230 + $0x58] sm:$0xff]
    %v333 = vld [vmem:[%s230 + $0x60] sm:$0xff]
    %v334 = vld [vmem:[%s230 + $0x68] sm:$0xff]
    %v335 = vld [vmem:[%s230 + $0x70] sm:$0xff]
    %v336 = vld [vmem:[%s230 + $0x78] sm:$0xff]
    %v337 = vpack.c.bf16 %v290, %v289
    %v338 = vpack.c.bf16 %v292, %v291
    %v339 = vpack.c.bf16 %v294, %v293
    %v340 = vpack.c.bf16 %v296, %v295
    %v341 = vpack.c.bf16 %v298, %v297
    %v342 = vpack.c.bf16 %v300, %v299
    %v343 = vpack.c.bf16 %v302, %v301
    %v344 = vpack.c.bf16 %v304, %v303
    %v345 = vpack.c.bf16 %v306, %v305
    %v346 = vpack.c.bf16 %v308, %v307
    %v347 = vpack.c.bf16 %v310, %v309
    %v348 = vpack.c.bf16 %v312, %v311
    %v349 = vpack.c.bf16 %v314, %v313
    %v350 = vpack.c.bf16 %v316, %v315
    %v351 = vpack.c.bf16 %v318, %v317
    %v352 = vpack.c.bf16 %v320, %v319
    %v354 = vsel %vm98, %v337, 0
    %v357 = vsel %vm98, %v338, 0
    %v360 = vsel %vm98, %v339, 0
    %v363 = vsel %vm98, %v340, 0
    %v366 = vsel %vm98, %v341, 0
    %v369 = vsel %vm98, %v342, 0
    %v372 = vsel %vm98, %v343, 0
    %v375 = vsel %vm98, %v344, 0
    %v378 = vsel %vm98, %v345, 0
    %v381 = vsel %vm98, %v346, 0
    %v384 = vsel %vm98, %v347, 0
    %v387 = vsel %vm98, %v348, 0
    %v390 = vsel %vm98, %v349, 0
    %v393 = vsel %vm98, %v350, 0
    %v396 = vsel %vm98, %v351, 0
    %v399 = vsel %vm98, %v352, 0
    %401 = vmatprep.subr.bf16.mxu0 0
    %402 = vmatpush1.bf16.xpose.msra.mxu0 %v399
    %403 = vmatprep.subr.bf16.mxu0 0
    %404 = vmatpush1.bf16.xpose.msra.mxu0 %v396
    %405 = vmatprep.subr.bf16.mxu0 0
    %406 = vmatpush1.bf16.xpose.msra.mxu0 %v393
    %407 = vmatprep.subr.bf16.mxu0 0
    %408 = vmatpush1.bf16.xpose.msra.mxu0 %v390
    %409 = vmatprep.subr.bf16.mxu0 0
    %410 = vmatpush1.bf16.xpose.msra.mxu0 %v387
    %411 = vmatprep.subr.bf16.mxu0 0
    %412 = vmatpush1.bf16.xpose.msra.mxu0 %v384
    %413 = vmatprep.subr.bf16.mxu0 0
    %414 = vmatpush1.bf16.xpose.msra.mxu0 %v381
    %415 = vmatprep.subr.bf16.mxu0 0
    %416 = vmatpush1.bf16.xpose.msra.mxu0 %v378
    %417 = vmatprep.subr.bf16.mxu0 0
    %418 = vmatpush2.bf16.xpose.msra.mxu0 0
    %419 = vmatprep.subr.bf16.mxu0 0
    %420 = vmatpush2.bf16.xpose.msra.mxu0 0
    %421 = vmatprep.subr.bf16.mxu0 0
    %422 = vmatpush2.bf16.xpose.msra.mxu0 0
    %423 = vmatprep.subr.bf16.mxu0 0
    %424 = vmatpush2.bf16.xpose.msra.mxu0 0
    %425 = vmatprep.subr.bf16.mxu0 0
    %426 = vmatpush2.bf16.xpose.msra.mxu0 0
    %427 = vmatprep.subr.bf16.mxu0 0
    %428 = vmatpush2.bf16.xpose.msra.mxu0 0
    %429 = vmatprep.subr.bf16.mxu0 0
    %430 = vmatpush2.bf16.xpose.msra.mxu0 0
    %431 = vmatprep.subr.bf16.mxu0 0
    %432 = vmatpush2.bf16.xpose.msra.mxu0 0
    %433 = vmatprep.mubr.bf16.mxu0 0
    %434 = vmatmul.mubr.bf16.gmra.mxu0 %v354
    %v435 = vpop.f32.mrf.mxu0
    %v436 = vadd.f32 0.0, %v435
    %v437 = vpop.f32.mrf.mxu0
    %v438 = vpop.f32.mrf.mxu0
    %v439 = vadd.f32 0.0, %v438
    %v440 = vpop.f32.mrf.mxu0
    %441 = vmatprep.mubr.bf16.mxu0 0
    %442 = vmatmul.mubr.bf16.gmra.mxu0 %v357
    %v443 = vpop.f32.mrf.mxu0
    %v444 = vadd.f32 0.0, %v443
    %v445 = vpop.f32.mrf.mxu0
    %v446 = vpop.f32.mrf.mxu0
    %v447 = vadd.f32 0.0, %v446
    %v448 = vpop.f32.mrf.mxu0
    %449 = vmatprep.mubr.bf16.mxu0 0
    %450 = vmatmul.mubr.bf16.gmra.mxu0 %v360
    %v451 = vpop.f32.mrf.mxu0
    %v452 = vadd.f32 0.0, %v451
    %v453 = vpop.f32.mrf.mxu0
    %v454 = vpop.f32.mrf.mxu0
    %v455 = vadd.f32 0.0, %v454
    %v456 = vpop.f32.mrf.mxu0
    %457 = vmatprep.mubr.bf16.mxu0 0
    %458 = vmatmul.mubr.bf16.gmra.mxu0 %v363
    %v459 = vpop.f32.mrf.mxu0
    %v460 = vadd.f32 0.0, %v459
    %v461 = vpop.f32.mrf.mxu0
    %v462 = vpop.f32.mrf.mxu0
    %v463 = vadd.f32 0.0, %v462
    %v464 = vpop.f32.mrf.mxu0
    %465 = vmatprep.mubr.bf16.mxu0 0
    %466 = vmatmul.mubr.bf16.gmra.mxu0 %v366
    %v467 = vpop.f32.mrf.mxu0
    %v468 = vadd.f32 0.0, %v467
    %v469 = vpop.f32.mrf.mxu0
    %v470 = vpop.f32.mrf.mxu0
    %v471 = vadd.f32 0.0, %v470
    %v472 = vpop.f32.mrf.mxu0
    %473 = vmatprep.mubr.bf16.mxu0 0
    %474 = vmatmul.mubr.bf16.gmra.mxu0 %v369
    %v475 = vpop.f32.mrf.mxu0
    %v476 = vadd.f32 0.0, %v475
    %v477 = vpop.f32.mrf.mxu0
    %v478 = vpop.f32.mrf.mxu0
    %v479 = vadd.f32 0.0, %v478
    %v480 = vpop.f32.mrf.mxu0
    %481 = vmatprep.mubr.bf16.mxu0 0
    %482 = vmatmul.mubr.bf16.gmra.mxu0 %v372
    %v483 = vpop.f32.mrf.mxu0
    %v484 = vadd.f32 0.0, %v483
    %v485 = vpop.f32.mrf.mxu0
    %v486 = vpop.f32.mrf.mxu0
    %v487 = vadd.f32 0.0, %v486
    %v488 = vpop.f32.mrf.mxu0
    %489 = vmatprep.mubr.bf16.mxu0 0
    %490 = vmatmul.mubr.bf16.gmra.mxu0 %v375
    %v491 = vpop.f32.mrf.mxu0
    %v492 = vadd.f32 0.0, %v491
    %v493 = vpop.f32.mrf.mxu0
    %v494 = vpop.f32.mrf.mxu0
    %v495 = vadd.f32 0.0, %v494
    %v496 = vpop.f32.mrf.mxu0
    %497 = vdwg.mxu0
    %v498 = vld [vmem:[%s3] sm:$0xff]
    %v499 = vld [vmem:[%s3 + $0x8] sm:$0xff]
    %v500 = vld [vmem:[%s3 + $0x10] sm:$0xff]
    %v501 = vld [vmem:[%s3 + $0x18] sm:$0xff]
    %v502 = vld [vmem:[%s3 + $0x20] sm:$0xff]
    %v503 = vld [vmem:[%s3 + $0x28] sm:$0xff]
    %v504 = vld [vmem:[%s3 + $0x30] sm:$0xff]
    %v505 = vld [vmem:[%s3 + $0x38] sm:$0xff]
    %v506 = vld [vmem:[%s3 + $0x40] sm:$0xff]
    %v507 = vld [vmem:[%s3 + $0x48] sm:$0xff]
    %v508 = vld [vmem:[%s3 + $0x50] sm:$0xff]
    %v509 = vld [vmem:[%s3 + $0x58] sm:$0xff]
    %v510 = vld [vmem:[%s3 + $0x60] sm:$0xff]
    %v511 = vld [vmem:[%s3 + $0x68] sm:$0xff]
    %v512 = vld [vmem:[%s3 + $0x70] sm:$0xff]
    %v513 = vld [vmem:[%s3 + $0x78] sm:$0xff]
    %v514 = vld [vmem:[%s4] sm:$0x1]
    %515 = vset.pattern.permute.xlu0 0
    %516 = vperm.xlu0 %515, %v498
    %v517 = vpop.permute.xlu0 %516
    %518 = vset.pattern.permute.xlu0 0
    %519 = vperm.xlu0 %518, %v499
    %v520 = vpop.permute.xlu0 %519
    %521 = vset.pattern.permute.xlu0 0
    %522 = vperm.xlu0 %521, %v500
    %v523 = vpop.permute.xlu0 %522
    %524 = vset.pattern.permute.xlu0 0
    %525 = vperm.xlu0 %524, %v501
    %v526 = vpop.permute.xlu0 %525
    %527 = vset.pattern.permute.xlu0 0
    %528 = vperm.xlu0 %527, %v502
    %v529 = vpop.permute.xlu0 %528
    %530 = vset.pattern.permute.xlu0 0
    %531 = vperm.xlu0 %530, %v503
    %v532 = vpop.permute.xlu0 %531
    %533 = vset.pattern.permute.xlu0 0
    %534 = vperm.xlu0 %533, %v504
    %v535 = vpop.permute.xlu0 %534
    %536 = vset.pattern.permute.xlu0 0
    %537 = vperm.xlu0 %536, %v505
    %v538 = vpop.permute.xlu0 %537
    %539 = vset.pattern.permute.xlu0 0
    %540 = vperm.xlu0 %539, %v506
    %v541 = vpop.permute.xlu0 %540
    %542 = vset.pattern.permute.xlu0 0
    %543 = vperm.xlu0 %542, %v507
    %v544 = vpop.permute.xlu0 %543
    %545 = vset.pattern.permute.xlu0 0
    %546 = vperm.xlu0 %545, %v508
    %v547 = vpop.permute.xlu0 %546
    %548 = vset.pattern.permute.xlu0 0
    %549 = vperm.xlu0 %548, %v509
    %v550 = vpop.permute.xlu0 %549
    %551 = vset.pattern.permute.xlu0 0
    %552 = vperm.xlu0 %551, %v510
    %v553 = vpop.permute.xlu0 %552
    %554 = vset.pattern.permute.xlu0 0
    %555 = vperm.xlu0 %554, %v511
    %v556 = vpop.permute.xlu0 %555
    %557 = vset.pattern.permute.xlu0 0
    %558 = vperm.xlu0 %557, %v512
    %v559 = vpop.permute.xlu0 %558
    %560 = vset.pattern.permute.xlu0 0
    %561 = vperm.xlu0 %560, %v513
    %v562 = vpop.permute.xlu0 %561
    %v563 = vlaneseq
    %v564 = vshrl.u32 %v563, 7
    %v565 = vsub.s32 0, %v564
    %v566 = vrot.slane %v514, %v565
    %vm567 = vcmp.eq.s32.totalorder %v517, %v566
    %vm568 = vcmp.eq.s32.totalorder %v520, %v566
    %vm569 = vcmp.eq.s32.totalorder %v523, %v566
    %vm570 = vcmp.eq.s32.totalorder %v526, %v566
    %vm571 = vcmp.eq.s32.totalorder %v529, %v566
    %vm572 = vcmp.eq.s32.totalorder %v532, %v566
    %vm573 = vcmp.eq.s32.totalorder %v535, %v566
    %vm574 = vcmp.eq.s32.totalorder %v538, %v566
    %vm575 = vcmp.eq.s32.totalorder %v541, %v566
    %vm576 = vcmp.eq.s32.totalorder %v544, %v566
    %vm577 = vcmp.eq.s32.totalorder %v547, %v566
    %vm578 = vcmp.eq.s32.totalorder %v550, %v566
    %vm579 = vcmp.eq.s32.totalorder %v553, %v566
    %vm580 = vcmp.eq.s32.totalorder %v556, %v566
    %vm581 = vcmp.eq.s32.totalorder %v559, %v566
    %vm582 = vcmp.eq.s32.totalorder %v562, %v566
    %v583 = vmax.f32 %v436, 0.0
    %v584 = vmax.f32 %v439, 0.0
    %v585 = vmax.f32 %v444, 0.0
    %v586 = vmax.f32 %v447, 0.0
    %v587 = vmax.f32 %v452, 0.0
    %v588 = vmax.f32 %v455, 0.0
    %v589 = vmax.f32 %v460, 0.0
    %v590 = vmax.f32 %v463, 0.0
    %v591 = vmax.f32 %v468, 0.0
    %v592 = vmax.f32 %v471, 0.0
    %v593 = vmax.f32 %v476, 0.0
    %v594 = vmax.f32 %v479, 0.0
    %v595 = vmax.f32 %v484, 0.0
    %v596 = vmax.f32 %v487, 0.0
    %v597 = vmax.f32 %v492, 0.0
    %v598 = vmax.f32 %v495, 0.0
    %v599 = vsel %vm567, %v583, 0.0
    %v600 = vsel %vm568, %v584, 0.0
    %v601 = vsel %vm569, %v585, 0.0
    %v602 = vsel %vm570, %v586, 0.0
    %v603 = vsel %vm571, %v587, 0.0
    %v604 = vsel %vm572, %v588, 0.0
    %v605 = vsel %vm573, %v589, 0.0
    %v606 = vsel %vm574, %v590, 0.0
    %v607 = vsel %vm575, %v591, 0.0
    %v608 = vsel %vm576, %v592, 0.0
    %v609 = vsel %vm577, %v593, 0.0
    %v610 = vsel %vm578, %v594, 0.0
    %v611 = vsel %vm579, %v595, 0.0
    %v612 = vsel %vm580, %v596, 0.0
    %v613 = vsel %vm581, %v597, 0.0
    %v614 = vsel %vm582, %v598, 0.0
    %v615 = vpack.c.bf16 %v600, %v599
    %v616 = vpack.c.bf16 %v602, %v601
    %v617 = vpack.c.bf16 %v604, %v603
    %v618 = vpack.c.bf16 %v606, %v605
    %v619 = vpack.c.bf16 %v608, %v607
    %v620 = vpack.c.bf16 %v610, %v609
    %v621 = vpack.c.bf16 %v612, %v611
    %v622 = vpack.c.bf16 %v614, %v613
    %v623 = vpack.c.bf16 %v322, %v321
    %v624 = vpack.c.bf16 %v324, %v323
    %v625 = vpack.c.bf16 %v326, %v325
    %v626 = vpack.c.bf16 %v328, %v327
    %v627 = vpack.c.bf16 %v330, %v329
    %v628 = vpack.c.bf16 %v332, %v331
    %v629 = vpack.c.bf16 %v334, %v333
    %v630 = vpack.c.bf16 %v336, %v335
    %631 = vmatprep.subr.bf16.mxu0 0
    %632 = vmatpush1.bf16.msra.mxu0 %v630
    %633 = vmatprep.subr.bf16.mxu0 0
    %634 = vmatpush1.bf16.msra.mxu0 %v629
    %635 = vmatprep.subr.bf16.mxu0 0
    %636 = vmatpush1.bf16.msra.mxu0 %v628
    %637 = vmatprep.subr.bf16.mxu0 0
    %638 = vmatpush1.bf16.msra.mxu0 %v627
    %639 = vmatprep.subr.bf16.mxu0 0
    %640 = vmatpush1.bf16.msra.mxu0 %v626
    %641 = vmatprep.subr.bf16.mxu0 0
    %642 = vmatpush1.bf16.msra.mxu0 %v625
    %643 = vmatprep.subr.bf16.mxu0 0
    %644 = vmatpush1.bf16.msra.mxu0 %v624
    %645 = vmatprep.subr.bf16.mxu0 0
    %646 = vmatpush1.bf16.msra.mxu0 %v623
    %647 = vmatprep.subr.bf16.mxu0 0
    %648 = vmatpush2.bf16.msra.mxu0 0
    %649 = vmatprep.subr.bf16.mxu0 0
    %650 = vmatpush2.bf16.msra.mxu0 0
    %651 = vmatprep.subr.bf16.mxu0 0
    %652 = vmatpush2.bf16.msra.mxu0 0
    %653 = vmatprep.subr.bf16.mxu0 0
    %654 = vmatpush2.bf16.msra.mxu0 0
    %655 = vmatprep.subr.bf16.mxu0 0
    %656 = vmatpush2.bf16.msra.mxu0 0
    %657 = vmatprep.subr.bf16.mxu0 0
    %658 = vmatpush2.bf16.msra.mxu0 0
    %659 = vmatprep.subr.bf16.mxu0 0
    %660 = vmatpush2.bf16.msra.mxu0 0
    %661 = vmatprep.subr.bf16.mxu0 0
    %662 = vmatpush2.bf16.msra.mxu0 0
    %663 = vmatprep.mubr.bf16.mxu0 0
    %664 = vmatmul.mubr.bf16.gmra.mxu0 %v615
    %v665 = vpop.f32.mrf.mxu0
    %v666 = vadd.f32 0.0, %v665
    %v667 = vpop.f32.mrf.mxu0
    %v668 = vpop.f32.mrf.mxu0
    %v669 = vadd.f32 0.0, %v668
    %v670 = vpop.f32.mrf.mxu0
    %671 = vmatprep.mubr.bf16.mxu0 0
    %672 = vmatmul.mubr.bf16.gmra.mxu0 %v616
    %v673 = vpop.f32.mrf.mxu0
    %v674 = vadd.f32 0.0, %v673
    %v675 = vpop.f32.mrf.mxu0
    %v676 = vpop.f32.mrf.mxu0
    %v677 = vadd.f32 0.0, %v676
    %v678 = vpop.f32.mrf.mxu0
    %679 = vmatprep.mubr.bf16.mxu0 0
    %680 = vmatmul.mubr.bf16.gmra.mxu0 %v617
    %v681 = vpop.f32.mrf.mxu0
    %v682 = vadd.f32 0.0, %v681
    %v683 = vpop.f32.mrf.mxu0
    %v684 = vpop.f32.mrf.mxu0
    %v685 = vadd.f32 0.0, %v684
    %v686 = vpop.f32.mrf.mxu0
    %687 = vmatprep.mubr.bf16.mxu0 0
    %688 = vmatmul.mubr.bf16.gmra.mxu0 %v618
    %v689 = vpop.f32.mrf.mxu0
    %v690 = vadd.f32 0.0, %v689
    %v691 = vpop.f32.mrf.mxu0
    %v692 = vpop.f32.mrf.mxu0
    %v693 = vadd.f32 0.0, %v692
    %v694 = vpop.f32.mrf.mxu0
    %695 = vmatprep.mubr.bf16.mxu0 0
    %696 = vmatmul.mubr.bf16.gmra.mxu0 %v619
    %v697 = vpop.f32.mrf.mxu0
    %v698 = vadd.f32 0.0, %v697
    %v699 = vpop.f32.mrf.mxu0
    %v700 = vpop.f32.mrf.mxu0
    %v701 = vadd.f32 0.0, %v700
    %v702 = vpop.f32.mrf.mxu0
    %703 = vmatprep.mubr.bf16.mxu0 0
    %704 = vmatmul.mubr.bf16.gmra.mxu0 %v620
    %v705 = vpop.f32.mrf.mxu0
    %v706 = vadd.f32 0.0, %v705
    %v707 = vpop.f32.mrf.mxu0
    %v708 = vpop.f32.mrf.mxu0
    %v709 = vadd.f32 0.0, %v708
    %v710 = vpop.f32.mrf.mxu0
    %711 = vmatprep.mubr.bf16.mxu0 0
    %712 = vmatmul.mubr.bf16.gmra.mxu0 %v621
    %v713 = vpop.f32.mrf.mxu0
    %v714 = vadd.f32 0.0, %v713
    %v715 = vpop.f32.mrf.mxu0
    %v716 = vpop.f32.mrf.mxu0
    %v717 = vadd.f32 0.0, %v716
    %v718 = vpop.f32.mrf.mxu0
    %719 = vmatprep.mubr.bf16.mxu0 0
    %720 = vmatmul.mubr.bf16.gmra.mxu0 %v622
    %v721 = vpop.f32.mrf.mxu0
    %v722 = vadd.f32 0.0, %v721
    %v723 = vpop.f32.mrf.mxu0
    %v724 = vpop.f32.mrf.mxu0
    %v725 = vadd.f32 0.0, %v724
    %v726 = vpop.f32.mrf.mxu0
    %727 = vdwg.mxu0
    %728 = vst.msk [vmem:[#allocation3] sm:$0xff] %vm98, %v666
    %729 = vst.msk [vmem:[#allocation3 + $0x8] sm:$0xff] %vm98, %v669
    %732 = vrot.lane.b32.xlu0 %v674, 4
    %v733 = vpop.permute.xlu0 %732
    %734 = vrot.lane.b32.xlu0 %v677, 4
    %v735 = vpop.permute.xlu0 %734
    %vm738 = vcmask 64544
    %739 = vst.msk [vmem:[#allocation3] sm:$0xff] %vm738, %v733
    %740 = vst.msk [vmem:[#allocation3 + $0x8] sm:$0xff] %vm738, %v735
    %743 = vrot.lane.b32.xlu0 %v682, 8
    %v744 = vpop.permute.xlu0 %743
    %745 = vrot.lane.b32.xlu0 %v685, 8
    %v746 = vpop.permute.xlu0 %745
    %vm749 = vcmask 97344
    %750 = vst.msk [vmem:[#allocation3] sm:$0xff] %vm749, %v744
    %751 = vst.msk [vmem:[#allocation3 + $0x8] sm:$0xff] %vm749, %v746
    %754 = vrot.lane.b32.xlu0 %v690, 12
    %v755 = vpop.permute.xlu0 %754
    %756 = vrot.lane.b32.xlu0 %v693, 12
    %v757 = vpop.permute.xlu0 %756
    %vm760 = vcmask 130144
    %761 = vst.msk [vmem:[#allocation3] sm:$0xff] %vm760, %v755
    %762 = vst.msk [vmem:[#allocation3 + $0x8] sm:$0xff] %vm760, %v757
    %765 = vrot.lane.b32.xlu0 %v698, 16
    %v766 = vpop.permute.xlu0 %765
    %767 = vrot.lane.b32.xlu0 %v701, 16
    %v768 = vpop.permute.xlu0 %767
    %vm771 = vcmask 162944
    %772 = vst.msk [vmem:[#allocation3] sm:$0xff] %vm771, %v766
    %773 = vst.msk [vmem:[#allocation3 + $0x8] sm:$0xff] %vm771, %v768
    %776 = vrot.lane.b32.xlu0 %v706, 20
    %v777 = vpop.permute.xlu0 %776
    %778 = vrot.lane.b32.xlu0 %v709, 20
    %v779 = vpop.permute.xlu0 %778
    %vm782 = vcmask 195744
    %783 = vst.msk [vmem:[#allocation3] sm:$0xff] %vm782, %v777
    %784 = vst.msk [vmem:[#allocation3 + $0x8] sm:$0xff] %vm782, %v779
    %787 = vrot.lane.b32.xlu0 %v714, 24
    %v788 = vpop.permute.xlu0 %787
    %789 = vrot.lane.b32.xlu0 %v717, 24
    %v790 = vpop.permute.xlu0 %789
    %vm793 = vcmask 228544
    %794 = vst.msk [vmem:[#allocation3] sm:$0xff] %vm793, %v788
    %795 = vst.msk [vmem:[#allocation3 + $0x8] sm:$0xff] %vm793, %v790
    %798 = vrot.lane.b32.xlu0 %v722, 28
    %v799 = vpop.permute.xlu0 %798
    %800 = vrot.lane.b32.xlu0 %v725, 28
    %v801 = vpop.permute.xlu0 %800
    %vm804 = vcmask 261344
    %805 = vst.msk [vmem:[#allocation3] sm:$0xff] %vm804, %v799
    %806 = vst.msk [vmem:[#allocation3 + $0x8] sm:$0xff] %vm804, %v801
    %v807 = vld [vmem:[%s6] sm:$0xff]
    %v808 = vld [vmem:[%s6 + $0x8] sm:$0xff]
    %v809 = vld [vmem:[%s6 + $0x10] sm:$0xff]
    %v810 = vld [vmem:[%s6 + $0x18] sm:$0xff]
    %v811 = vpack.c.bf16 %v808, %v807
    %v812 = vpack.c.bf16 %v810, %v809
    %v813 = vld [vmem:[#allocation3] sm:$0xff]
    %v814 = vld [vmem:[#allocation3 + $0x8] sm:$0xff]
    %v815 = vpack.c.bf16 %v814, %v813
    %v817 = vsel %vm53, %v815, 0
    %819 = vmatprep.subr.bf16.mxu0 0
    %820 = vmatpush1.bf16.msra.mxu0 0
    %821 = vmatprep.subr.bf16.mxu0 0
    %822 = vmatpush1.bf16.msra.mxu0 0
    %823 = vmatprep.subr.bf16.mxu0 0
    %824 = vmatpush1.bf16.msra.mxu0 0
    %825 = vmatprep.subr.bf16.mxu0 0
    %826 = vmatpush1.bf16.msra.mxu0 0
    %827 = vmatprep.subr.bf16.mxu0 0
    %828 = vmatpush1.bf16.msra.mxu0 0
    %829 = vmatprep.subr.bf16.mxu0 0
    %830 = vmatpush1.bf16.msra.mxu0 0
    %831 = vmatprep.subr.bf16.mxu0 0
    %832 = vmatpush1.bf16.msra.mxu0 %v812
    %833 = vmatprep.subr.bf16.mxu0 0
    %834 = vmatpush1.bf16.msra.mxu0 %v811
    %835 = vmatprep.subr.bf16.mxu0 0
    %836 = vmatpush2.bf16.msra.mxu0 0
    %837 = vmatprep.subr.bf16.mxu0 0
    %838 = vmatpush2.bf16.msra.mxu0 0
    %839 = vmatprep.subr.bf16.mxu0 0
    %840 = vmatpush2.bf16.msra.mxu0 0
    %841 = vmatprep.subr.bf16.mxu0 0
    %842 = vmatpush2.bf16.msra.mxu0 0
    %843 = vmatprep.subr.bf16.mxu0 0
    %844 = vmatpush2.bf16.msra.mxu0 0
    %845 = vmatprep.subr.bf16.mxu0 0
    %846 = vmatpush2.bf16.msra.mxu0 0
    %847 = vmatprep.subr.bf16.mxu0 0
    %848 = vmatpush2.bf16.msra.mxu0 0
    %849 = vmatprep.subr.bf16.mxu0 0
    %850 = vmatpush2.bf16.msra.mxu0 0
    %851 = vmatprep.mubr.bf16.mxu0 0
    %852 = vmatmul.mubr.bf16.gmra.mxu0 %v817
    %v853 = vpop.f32.mrf.mxu0
    %v854 = vadd.f32 0.0, %v853
    %v855 = vpop.f32.mrf.mxu0
    %v856 = vpop.f32.mrf.mxu0
    %v857 = vadd.f32 0.0, %v856
    %v858 = vpop.f32.mrf.mxu0
    %859 = vdwg.mxu0
    %861 = vset.pattern.permute.xlu0 0
    %862 = vperm.xlu0 %861, %v32
    %v863 = vpop.permute.xlu0 %862
    %866 = vset.pattern.permute.xlu0 0
    %867 = vperm.xlu0 %866, %v33
    %v868 = vpop.permute.xlu0 %867
    %v870 = vmul.f32 %v854, %v863
    %v871 = vmul.f32 %v857, %v868
    %872 = vst.msk [vmem:[#allocation4] sm:$0xff] %vm53, %v870
    %873 = vst.msk [vmem:[#allocation4 + $0x8] sm:$0xff] %vm53, %v871
    // Predicated region
    $region30: #{tpu_custom_call.1} parent=1 // pred_check
      _
    $region31: #{tpu_custom_call.1} parent=1 // pred_check_branch
      %875 = sbr.rel (0) target = $region33
    $region32: #{tpu_custom_call.1} parent=1 // pred_region
      %s877 = ssub.s32 256, 256
      %878 = vsyncadd [#allocation5], %s877
      %s879 = sshll.u32 [#allocation4], 4
      %s880 = int_to_ptr.vmem [resolvable:$true] %s879
      %885 = dma.vmem_to_hbm [thread:$0]  %s880, 256, %s7, [#allocation5], 128, 128, 8
    $region33: #{tpu_custom_call.1} parent=1 // pred_fallthru
      _
    // Predicated region
    $region34: #{tpu_custom_call.1} parent=1 // pred_check
      _
    $region35: #{tpu_custom_call.1} parent=1 // pred_check_branch
      %887 = sbr.rel (0) target = $region37
    $region36: #{tpu_custom_call.1} parent=1 // pred_region
      %888 = dma.done [#allocation5], 256
    $region37: #{tpu_custom_call.1} parent=1 // pred_fallthru
      _
    %889 = vsyncpa [#allocation5], 1

</llo_original>
